<compile_context>
chip_gen: v7x
topology: tpu7x:2x2x1
jax: 0.10.0
libtpu: 0.0.40
codegen_flags: <defaults>
</compile_context>

<pallas_src>
import functools

import jax
import jax.numpy as jnp
from jax import lax
from jax.experimental import pallas as pl
from jax.experimental.pallas import tpu as pltpu

# Cost assigned to padded (real x pad / pad x real) entries.  With eps >= 1e-4
# and O(1..100) potentials, exp((-_BIG_COST + u + v)/eps) underflows to exactly
# 0.0 in f32, so padded entries contribute exactly zero to every reduction.
_BIG_COST = 1.0e6
# Width of the ones operand used for MXU-offloaded sums (>=8 keeps the matmul
# operands sublane-aligned; all rows/cols of the result are identical).
_SUM_WIDTH = 8


def _round_up(x, m):
    return ((x + m - 1) // m) * m


def _sinkhorn_kernel(mu_ref, nu_ref, c_ref, cost_ref, pi_ref, *,
                     eps, max_iter, exp_dtype):
    # Block shapes: mu (1, Np, 1), nu (1, 1, Mp), C (1, Np, Mp).
    mu = mu_ref[0]                 # (Np, 1)
    nu = nu_ref[0]                 # (1, Mp)
    C = c_ref[0]                   # (Np, Mp)

    log_mu = jnp.log(mu + 1e-8)    # (Np, 1)
    log_nu = jnp.log(nu + 1e-8)    # (1, Mp)

    inv_eps = jnp.float32(1.0 / eps)

    # Scaled modified cost m = (-C + u + v) / eps, carried across iterations.
    # With u0 = v0 = 1 (torch reference):  m0 = (2 - C) / eps.
    # Scaled potential updates are additive deltas:
    #   dv = log_nu - lse_rows(m),   du = log_mu - lse_cols(m + dv)
    # which removes the two (N,M) f32 divides per iteration and the full
    # recompute of m for the u-update.
    m0 = (2.0 - C) * inv_eps

    Np, Mp = C.shape
    # Ones operands so the logsumexp sums run on the MXU (idle otherwise).
    ones_rows = jnp.ones((_SUM_WIDTH, Np), exp_dtype)   # sums over rows (axis 0)
    ones_cols = jnp.ones((Mp, _SUM_WIDTH), exp_dtype)   # sums over cols (axis 1)

    def body(_, m):
        # --- v update: logsumexp over rows i, per column j ---
        mx0 = jnp.max(m, axis=0, keepdims=True)                          # (1, Mp)
        e0 = jnp.exp((m - mx0).astype(exp_dtype))                        # (Np, Mp)
        s0 = jnp.dot(ones_rows, e0,
                     preferred_element_type=jnp.float32)[0:1, :]         # (1, Mp)
        dv = log_nu - (jnp.log(s0) + mx0)                                # (1, Mp)
        m = m + dv
        # --- u update: logsumexp over columns j, per row i (uses new v) ---
        mx1 = jnp.max(m, axis=1, keepdims=True)                          # (Np, 1)
        e1 = jnp.exp((m - mx1).astype(exp_dtype))                        # (Np, Mp)
        s1 = jnp.dot(e1, ones_cols,
                     preferred_element_type=jnp.float32)[:, 0:1]         # (Np, 1)
        du = log_mu - (jnp.log(s1) + mx1)                                # (Np, 1)
        m = m + du
        return m

    m = lax.fori_loop(0, max_iter, body, m0)

    pi = jnp.exp(m)                                                      # (Np, Mp)
    pi_ref[0] = pi.astype(pi_ref.dtype)

    # cost = sum_ij pi_ij * C_ij  (padded entries contribute exactly 0).
    cost = jnp.sum(pi * C, axis=1, keepdims=True)                        # (Np, 1)
    cost = jnp.sum(cost, axis=0, keepdims=True)                          # (1, 1)
    cost_ref[0] = cost.astype(cost_ref.dtype)


def sinkhorn_distance(mu, nu, C, *, eps=1e-3, max_iter=100, exp_in_bf16=False):
    """Matches SinkhornDistance(eps, max_iter, reduction='none').forward(mu, nu, C).

    exp_in_bf16: opt-in bf16 exp path (v6e/v7x EUP has bf16); keep False on v5e
    and whenever bit-closeness to the f32 reference matters.
    """
    B, N = mu.shape
    M = nu.shape[1]
    assert C.shape == (B, N, M)

    mu = mu.astype(jnp.float32)
    nu = nu.astype(jnp.float32)
    C = C.astype(jnp.float32)

    # Lane/sublane-dense padding.  Whenever any padding is required we add at
    # least one padded row AND column so the zero-cost pad/pad block anchors the
    # padded potentials (keeps cross entries at exp(...) == 0 exactly).
    if (N % 8 == 0) and (M % 128 == 0):
        Np, Mp = N, M
        mu_p = mu.reshape(B, N, 1)
        nu_p = nu.reshape(B, 1, M)
        C_p = C
    else:
        Np = _round_up(N + 1, 8)
        Mp = _round_up(M + 1, 128)
        mu_p = jnp.zeros((B, Np, 1), jnp.float32).at[:, :N, 0].set(mu)
        nu_p = jnp.zeros((B, 1, Mp), jnp.float32).at[:, 0, :M].set(nu)
        C_p = jnp.full((B, Np, Mp), jnp.float32(_BIG_COST))
        C_p = C_p.at[:, :N, :M].set(C)
        C_p = C_p.at[:, N:, M:].set(0.0)

    exp_dtype = jnp.bfloat16 if exp_in_bf16 else jnp.float32
    kernel = functools.partial(_sinkhorn_kernel, eps=eps, max_iter=max_iter,
                               exp_dtype=exp_dtype)

    # Explicit VMEM budget: double-buffered C + pi blocks, the carried m and exp
    # temporaries, plus generous slack.  Floor at the 32 MiB default, cap at the
    # v7x physical 64 MiB.
    needed = 16 * 4 * Np * Mp + (4 << 20)
    vmem_bytes = int(min(max(needed, 32 << 20), 64 << 20))

    cost3, pi_p = pl.pallas_call(
        kernel,
        out_shape=(
            jax.ShapeDtypeStruct((B, 1, 1), jnp.float32),
            jax.ShapeDtypeStruct((B, Np, Mp), jnp.float32),
        ),
        grid=(B,),
        in_specs=[
            pl.BlockSpec((1, Np, 1), lambda b: (b, 0, 0)),
            pl.BlockSpec((1, 1, Mp), lambda b: (b, 0, 0)),
            pl.BlockSpec((1, Np, Mp), lambda b: (b, 0, 0)),
        ],
        out_specs=(
            pl.BlockSpec((1, 1, 1), lambda b: (b, 0, 0)),
            pl.BlockSpec((1, Np, Mp), lambda b: (b, 0, 0)),
        ),
        # C is fully consumed inside the kernel before pi is written back, and
        # both use the same blocking, so alias the C buffer to the pi output.
        input_output_aliases={2: 1},
        compiler_params=pltpu.CompilerParams(
            dimension_semantics=("parallel",),
            vmem_limit_bytes=vmem_bytes,
        ),
    )(mu_p, nu_p, C_p)

    cost = cost3.reshape(B)          # torch.sum(..., dim=(-2, -1)) -> (B,)
    pi = pi_p[:, :N, :M]             # drop padding
    return cost, pi


def _sinkhorn_reference(mu, nu, C, eps, max_iter):
    """Pure-JAX transcription of the PyTorch module (for validation)."""
    mu = mu.astype(jnp.float32)
    nu = nu.astype(jnp.float32)
    C = C.astype(jnp.float32)

    def Mcuv(u, v):
        return (-C + u[:, :, None] + v[:, None, :]) / eps

    def body(_, uv):
        u, v = uv
        v = eps * (jnp.log(nu + 1e-8)
                   - jax.nn.logsumexp(Mcuv(u, v), axis=-2)) + v
        u = eps * (jnp.log(mu + 1e-8)
                   - jax.nn.logsumexp(Mcuv(u, v), axis=-1)) + u
        return (u, v)

    u, v = lax.fori_loop(0, max_iter, body,
                         (jnp.ones_like(mu), jnp.ones_like(nu)))
    pi = jnp.exp(Mcuv(u, v))
    cost = jnp.sum(pi * C, axis=(-2, -1))
    return cost, pi


if __name__ == "__main__":
    key = jax.random.PRNGKey(0)
    k_mu, k_nu, k_c = jax.random.split(key, 3)

    B, N, M = 2, 16, 16
    # mu / nu: positive marginals normalized to sum 1 per batch (typical usage).
    mu = jax.random.uniform(k_mu, (B, N), dtype=jnp.float32) + 0.1
    mu = mu / jnp.sum(mu, axis=-1, keepdims=True)
    nu = jax.random.uniform(k_nu, (B, M), dtype=jnp.float32) + 0.1
    nu = nu / jnp.sum(nu, axis=-1, keepdims=True)
    # C: non-negative cost matrix.
    C = jax.random.uniform(k_c, (B, N, M), dtype=jnp.float32)

    eps, max_iter = 1e-3, 100
    run = jax.jit(functools.partial(sinkhorn_distance, eps=eps, max_iter=max_iter))
    cost, pi = run(mu, nu, C)
    cost = jax.block_until_ready(cost)
    pi = jax.block_until_ready(pi)

    assert cost.shape == (B,)
    assert pi.shape == (B, N, M)
    assert bool(jnp.all(jnp.isfinite(cost))) and bool(jnp.all(jnp.isfinite(pi)))

    # Loose check against a pure-JAX transcription of the PyTorch reference
    # (remaining differences are f32 accumulation-order only).
    cost_ref, pi_ref = _sinkhorn_reference(mu, nu, C, eps, max_iter)
    assert bool(jnp.allclose(cost, cost_ref, rtol=0.1, atol=1e-6))
    assert bool(jnp.allclose(pi, pi_ref, rtol=0.2, atol=1e-4))

    print("KERNEL_OK")
</pallas_src>

<mosaic_0001>
module attributes {stable_mosaic.version = 11 : i64} {
  func.func @_sinkhorn_kernel(%arg0: i32, %arg1: memref<1x24x1xf32, #tpu.memory_space<vmem>>, %arg2: memref<1x1x128xf32, #tpu.memory_space<vmem>>, %arg3: memref<1x24x128xf32, #tpu.memory_space<vmem>>, %arg4: memref<1x1x1xf32, #tpu.memory_space<vmem>>, %arg5: memref<1x24x128xf32, #tpu.memory_space<vmem>>) attributes {dimension_semantics = [#tpu.dimension_semantics<parallel>], iteration_bounds = array<i64: 2>, scalar_prefetch = 0 : i64, scratch_operands = 0 : i64, tpu.core_type = #tpu.core_type<tc>, window_params = [{transform_indices = @transform_0, window_bounds = array<i64: 1, 24, 1>}, {transform_indices = @transform_1, window_bounds = array<i64: 1, 1, 128>}, {transform_indices = @transform_2, window_bounds = array<i64: 1, 24, 128>}, {transform_indices = @transform_3, window_bounds = array<i64: 1, 1, 1>}, {transform_indices = @transform_4, window_bounds = array<i64: 1, 24, 128>}]} {
    %c0 = arith.constant 0 : index
    %c0_0 = arith.constant 0 : index
    %c0_1 = arith.constant 0 : index
    %0 = vector.load %arg1[%c0, %c0_0, %c0_1] : memref<1x24x1xf32, #tpu.memory_space<vmem>>, vector<1x24x1xf32>
    %1 = vector.shape_cast %0 : vector<1x24x1xf32> to vector<24x1xf32>
    %c0_2 = arith.constant 0 : index
    %c0_3 = arith.constant 0 : index
    %c0_4 = arith.constant 0 : index
    %2 = vector.load %arg2[%c0_2, %c0_3, %c0_4] : memref<1x1x128xf32, #tpu.memory_space<vmem>>, vector<1x1x128xf32>
    %3 = vector.shape_cast %2 : vector<1x1x128xf32> to vector<1x128xf32>
    %c0_5 = arith.constant 0 : index
    %c0_6 = arith.constant 0 : index
    %c0_7 = arith.constant 0 : index
    %4 = vector.load %arg3[%c0_5, %c0_6, %c0_7] : memref<1x24x128xf32, #tpu.memory_space<vmem>>, vector<1x24x128xf32>
    %5 = vector.shape_cast %4 : vector<1x24x128xf32> to vector<24x128xf32>
    %cst = arith.constant 9.99999993E-9 : f32
    %6 = vector.broadcast %cst : f32 to vector<24x1xf32>
    %7 = arith.addf %1, %6 : vector<24x1xf32>
    %8 = math.log %7 : vector<24x1xf32>
    %cst_8 = arith.constant 9.99999993E-9 : f32
    %9 = vector.broadcast %cst_8 : f32 to vector<1x128xf32>
    %10 = arith.addf %3, %9 : vector<1x128xf32>
    %11 = math.log %10 : vector<1x128xf32>
    %cst_9 = arith.constant 2.000000e+00 : f32
    %12 = vector.broadcast %cst_9 : f32 to vector<24x128xf32>
    %13 = arith.subf %12, %5 : vector<24x128xf32>
    %cst_10 = arith.constant 1.000000e+03 : f32
    %14 = vector.broadcast %cst_10 : f32 to vector<24x128xf32>
    %15 = arith.mulf %13, %14 : vector<24x128xf32>
    %cst_11 = arith.constant 1.000000e+00 : f32
    %16 = vector.broadcast %cst_11 : f32 to vector<8x24xf32>
    %cst_12 = arith.constant 1.000000e+00 : f32
    %17 = vector.broadcast %cst_12 : f32 to vector<128x8xf32>
    %c0_i32 = arith.constant 0 : i32
    %c100_i32 = arith.constant 100 : i32
    %18 = arith.addi %c0_i32, %c100_i32 : i32
    %c1_i32 = arith.constant 1 : i32
    %19 = scf.for %arg6 = %c0_i32 to %18 step %c1_i32 iter_args(%arg7 = %15) -> (vector<24x128xf32>)  : i32 {
      %cst_21 = arith.constant dense<0xFF800000> : vector<128xf32>
      %32 = vector.multi_reduction <maximumf>, %arg7, %cst_21 [0] : vector<24x128xf32> to vector<128xf32>
      %33 = vector.shape_cast %32 : vector<128xf32> to vector<1x128xf32>
      %34 = vector.broadcast %33 : vector<1x128xf32> to vector<24x128xf32>
      %35 = arith.subf %arg7, %34 : vector<24x128xf32>
      %36 = math.exp %35 : vector<24x128xf32>
      %cst_22 = arith.constant dense<0.000000e+00> : vector<8x128xf32>
      %37 = tpu.matmul %16, %36, %cst_22 {dimension_numbers = #tpu.dot_dimension_numbers<[1], [0], [0], [1], [0, 0, 1, 1], [], []>} : vector<8x24xf32>, vector<24x128xf32>, vector<8x128xf32> -> vector<8x128xf32>
      %38 = vector.extract_strided_slice %37 {offsets = [0, 0], sizes = [1, 128], strides = [1, 1]} : vector<8x128xf32> to vector<1x128xf32>
      %39 = math.log %38 : vector<1x128xf32>
      %40 = arith.addf %39, %33 : vector<1x128xf32>
      %41 = arith.subf %11, %40 : vector<1x128xf32>
      %42 = vector.broadcast %41 : vector<1x128xf32> to vector<24x128xf32>
      %43 = arith.addf %arg7, %42 : vector<24x128xf32>
      %cst_23 = arith.constant dense<0xFF800000> : vector<24xf32>
      %44 = vector.multi_reduction <maximumf>, %43, %cst_23 [1] : vector<24x128xf32> to vector<24xf32>
      %45 = vector.shape_cast %44 : vector<24xf32> to vector<24x1xf32>
      %46 = vector.broadcast %45 : vector<24x1xf32> to vector<24x128xf32>
      %47 = arith.subf %43, %46 : vector<24x128xf32>
      %48 = math.exp %47 : vector<24x128xf32>
      %cst_24 = arith.constant dense<0.000000e+00> : vector<24x8xf32>
      %49 = tpu.matmul %48, %17, %cst_24 {dimension_numbers = #tpu.dot_dimension_numbers<[1], [0], [0], [1], [0, 0, 1, 1], [], []>} : vector<24x128xf32>, vector<128x8xf32>, vector<24x8xf32> -> vector<24x8xf32>
      %50 = vector.extract_strided_slice %49 {offsets = [0, 0], sizes = [24, 1], strides = [1, 1]} : vector<24x8xf32> to vector<24x1xf32>
      %51 = math.log %50 : vector<24x1xf32>
      %52 = arith.addf %51, %45 : vector<24x1xf32>
      %53 = arith.subf %8, %52 : vector<24x1xf32>
      %54 = vector.broadcast %53 : vector<24x1xf32> to vector<24x128xf32>
      %55 = arith.addf %43, %54 : vector<24x128xf32>
      scf.yield %55 : vector<24x128xf32>
    }
    %20 = math.exp %19 : vector<24x128xf32>
    %c0_13 = arith.constant 0 : index
    %c0_14 = arith.constant 0 : index
    %c0_15 = arith.constant 0 : index
    %21 = vector.load %arg5[%c0_13, %c0_14, %c0_15] : memref<1x24x128xf32, #tpu.memory_space<vmem>>, vector<1x24x128xf32>
    %22 = vector.shape_cast %21 : vector<1x24x128xf32> to vector<24x128xf32>
    %23 = vector.shape_cast %20 : vector<24x128xf32> to vector<1x24x128xf32>
    tpu.vector_store %arg5[%c0_13, %c0_14, %c0_15], %23 {strides = array<i32>} : memref<1x24x128xf32, #tpu.memory_space<vmem>>, vector<1x24x128xf32>,
    %24 = arith.mulf %20, %5 : vector<24x128xf32>
    %cst_16 = arith.constant dense<0.000000e+00> : vector<24xf32>
    %25 = vector.multi_reduction <add>, %24, %cst_16 [1] : vector<24x128xf32> to vector<24xf32>
    %26 = vector.shape_cast %25 : vector<24xf32> to vector<24x1xf32>
    %cst_17 = arith.constant dense<0.000000e+00> : vector<1xf32>
    %27 = vector.multi_reduction <add>, %26, %cst_17 [0] : vector<24x1xf32> to vector<1xf32>
    %28 = vector.shape_cast %27 : vector<1xf32> to vector<1x1xf32>
    %c0_18 = arith.constant 0 : index
    %c0_19 = arith.constant 0 : index
    %c0_20 = arith.constant 0 : index
    %29 = vector.load %arg4[%c0_18, %c0_19, %c0_20] : memref<1x1x1xf32, #tpu.memory_space<vmem>>, vector<1x1x1xf32>
    %30 = vector.shape_cast %29 : vector<1x1x1xf32> to vector<1x1xf32>
    %31 = vector.shape_cast %28 : vector<1x1xf32> to vector<1x1x1xf32>
    tpu.vector_store %arg4[%c0_18, %c0_19, %c0_20], %31 {strides = array<i32>} : memref<1x1x1xf32, #tpu.memory_space<vmem>>, vector<1x1x1xf32>,
    return
  }
  func.func @transform_0(%arg0: i32) -> (i32, i32, i32) {
    %c0_i32 = arith.constant 0 : i32
    %c0_i32_0 = arith.constant 0 : i32
    %c0_i32_1 = arith.constant 0 : i32
    return %arg0, %c0_i32, %c0_i32_0 : i32, i32, i32
  }
  func.func @transform_1(%arg0: i32) -> (i32, i32, i32) {
    %c0_i32 = arith.constant 0 : i32
    %c0_i32_0 = arith.constant 0 : i32
    %c0_i32_1 = arith.constant 0 : i32
    return %arg0, %c0_i32, %c0_i32_0 : i32, i32, i32
  }
  func.func @transform_2(%arg0: i32) -> (i32, i32, i32) {
    %c0_i32 = arith.constant 0 : i32
    %c0_i32_0 = arith.constant 0 : i32
    %c0_i32_1 = arith.constant 0 : i32
    return %arg0, %c0_i32, %c0_i32_0 : i32, i32, i32
  }
  func.func @transform_3(%arg0: i32) -> (i32, i32, i32) {
    %c0_i32 = arith.constant 0 : i32
    %c0_i32_0 = arith.constant 0 : i32
    %c0_i32_1 = arith.constant 0 : i32
    return %arg0, %c0_i32, %c0_i32_0 : i32, i32, i32
  }
  func.func @transform_4(%arg0: i32) -> (i32, i32, i32) {
    %c0_i32 = arith.constant 0 : i32
    %c0_i32_0 = arith.constant 0 : i32
    %c0_i32_1 = arith.constant 0 : i32
    return %arg0, %c0_i32, %c0_i32_0 : i32, i32, i32
  }
}

</mosaic_0001>

<llo_original>
// kernel: sinkhorn_distance.1
$region0: #{sinkhorn_distance.1}
  #allocation0 [shape = 'u32[]', space=smem, size = 0x4, offset = 0x4, fixed_abs, tag = 'smem constant byte address 0x4 - core index']
  #allocation1 [shape = 'u32[144,128]{1,0:T(1,128)}', space=vmem, size = 0x12000, scoped, tag = 'internal scratch']
  %s0 = inlined_call_operand.vmem [shape: f32[2,24,1], index: 0, kind: input, shape index: {}]
  %s1 = inlined_call_operand.vmem [shape: f32[2,1,128], index: 1, kind: input, shape index: {}]
  %s2 = inlined_call_operand.vmem [shape: f32[2,24,128], index: 2, kind: input, shape index: {}, may-alias: {2,4}]
  %s3 = inlined_call_operand.vmem [shape: f32[2,1,1], index: 3, kind: output, shape index: {0}]
  %s4 = inlined_call_operand.vmem [shape: f32[2,24,128], index: 4, kind: output, shape index: {1}, may-alias: {2,4}]
  %5 = xla_tuple %s3, %s4
  %s6 = sld [smem:[#allocation0]]
  $region60: #{sinkhorn_distance.1} parent=0
    _
  %s8 = ssub.s32 1, %s6
  %s9 = scalar_select 0, %s8, %s6
  loop: start=0, step=1, limit=4
  $region2: #{sinkhorn_distance.1} parent=0 // loop_pre_header
    _
  $region3: #{sinkhorn_distance.1} parent=0 // loop_header
    %s11 = sphi 0, %s15
    %p12 = scmp.ge.s32.totalorder %s11, 4
    %s21 = sphi 0, %s23
    %s24 = sphi 0, %s21
    %s25 = sphi 0, %s24
    %s41 = sphi 0, %s25
    %s47 = sphi 0, %s49
    %s50 = sphi 0, %s47
    %s51 = sphi 0, %s50
    %s67 = sphi 0, %s51
    %s73 = sphi 0, %s75
    %s76 = sphi 0, %s73
    %s77 = sphi 0, %s76
    %s93 = sphi 0, %s77
    %s99 = sphi 0, %s101
    %s102 = sphi 0, %s99
    %s103 = sphi 0, %s102
    %s119 = sphi 0, %s103
    %s125 = sphi 0, %s127
    %s128 = sphi 0, %s125
    %s129 = sphi 0, %s128
    %s145 = sphi 0, %s129
  $region4: #{sinkhorn_distance.1} parent=0 // loop_header_branch
    %14 = sbr.rel (%p12) target = $region8
  $region5: #{sinkhorn_distance.1} parent=0 // loop_body
    %s16 = ssub.s32 %s11, 1
    %s17 = ssub.s32 %s11, 2
    %s18 = sadd.s32 %s11, 1
    %s19 = ssub.s32 %s11, %s18
    %p20 = scmp.eq.s32.totalorder %s19, 0
    %s22 = sadd.s32 %s21, 1
    %s23 = scalar_select %p20, %s21, %s22
    %p26 = pneg %p20
    %p27 = scmp.eq.s32.totalorder %s11, 1
    %p28 = por %p26, %p27
    %p29 = scmp.ne.s32.totalorder %s21, %s24
    %p30 = scmp.eq.s32.totalorder %s11, 0
    %p31 = por %p29, %p30
    %p32 = scmp.ne.s32.totalorder %s21, %s24
    %p33 = scmp.eq.s32.totalorder %s16, 1
    %p34 = por %p32, %p33
    %p35 = scmp.ne.s32.totalorder %s24, %s25
    %p36 = scmp.eq.s32.totalorder %s16, 0
    %p37 = por %p35, %p36
    %p38 = scmp.ne.s32.totalorder %s24, %s25
    %p39 = scmp.eq.s32.totalorder %s17, 1
    %p40 = por %p38, %p39
    %p42 = scmp.ne.s32.totalorder %s25, %s41
    %p43 = scmp.eq.s32.totalorder %s17, 0
    %p44 = por %p42, %p43
    %s45 = ssub.s32 %s11, %s18
    %p46 = scmp.eq.s32.totalorder %s45, 0
    %s48 = sadd.s32 %s47, 1
    %s49 = scalar_select %p46, %s47, %s48
    %p52 = pneg %p46
    %p53 = scmp.eq.s32.totalorder %s11, 1
    %p54 = por %p52, %p53
    %p55 = scmp.ne.s32.totalorder %s47, %s50
    %p56 = scmp.eq.s32.totalorder %s11, 0
    %p57 = por %p55, %p56
    %p58 = scmp.ne.s32.totalorder %s47, %s50
    %p59 = scmp.eq.s32.totalorder %s16, 1
    %p60 = por %p58, %p59
    %p61 = scmp.ne.s32.totalorder %s50, %s51
    %p62 = scmp.eq.s32.totalorder %s16, 0
    %p63 = por %p61, %p62
    %p64 = scmp.ne.s32.totalorder %s50, %s51
    %p65 = scmp.eq.s32.totalorder %s17, 1
    %p66 = por %p64, %p65
    %p68 = scmp.ne.s32.totalorder %s51, %s67
    %p69 = scmp.eq.s32.totalorder %s17, 0
    %p70 = por %p68, %p69
    %s71 = ssub.s32 %s11, %s18
    %p72 = scmp.eq.s32.totalorder %s71, 0
    %s74 = sadd.s32 %s73, 1
    %s75 = scalar_select %p72, %s73, %s74
    %p78 = pneg %p72
    %p79 = scmp.eq.s32.totalorder %s11, 1
    %p80 = por %p78, %p79
    %p81 = scmp.ne.s32.totalorder %s73, %s76
    %p82 = scmp.eq.s32.totalorder %s11, 0
    %p83 = por %p81, %p82
    %p84 = scmp.ne.s32.totalorder %s73, %s76
    %p85 = scmp.eq.s32.totalorder %s16, 1
    %p86 = por %p84, %p85
    %p87 = scmp.ne.s32.totalorder %s76, %s77
    %p88 = scmp.eq.s32.totalorder %s16, 0
    %p89 = por %p87, %p88
    %p90 = scmp.ne.s32.totalorder %s76, %s77
    %p91 = scmp.eq.s32.totalorder %s17, 1
    %p92 = por %p90, %p91
    %p94 = scmp.ne.s32.totalorder %s77, %s93
    %p95 = scmp.eq.s32.totalorder %s17, 0
    %p96 = por %p94, %p95
    %s97 = ssub.s32 %s11, %s18
    %p98 = scmp.eq.s32.totalorder %s97, 0
    %s100 = sadd.s32 %s99, 1
    %s101 = scalar_select %p98, %s99, %s100
    %p104 = pneg %p98
    %p105 = scmp.eq.s32.totalorder %s11, 1
    %p106 = por %p104, %p105
    %p107 = scmp.ne.s32.totalorder %s99, %s102
    %p108 = scmp.eq.s32.totalorder %s11, 0
    %p109 = por %p107, %p108
    %p110 = scmp.ne.s32.totalorder %s99, %s102
    %p111 = scmp.eq.s32.totalorder %s16, 1
    %p112 = por %p110, %p111
    %p113 = scmp.ne.s32.totalorder %s102, %s103
    %p114 = scmp.eq.s32.totalorder %s16, 0
    %p115 = por %p113, %p114
    %p116 = scmp.ne.s32.totalorder %s102, %s103
    %p117 = scmp.eq.s32.totalorder %s17, 1
    %p118 = por %p116, %p117
    %p120 = scmp.ne.s32.totalorder %s103, %s119
    %p121 = scmp.eq.s32.totalorder %s17, 0
    %p122 = por %p120, %p121
    %s123 = ssub.s32 %s11, %s18
    %p124 = scmp.eq.s32.totalorder %s123, 0
    %s126 = sadd.s32 %s125, 1
    %s127 = scalar_select %p124, %s125, %s126
    %p130 = pneg %p124
    %p131 = scmp.eq.s32.totalorder %s11, 1
    %p132 = por %p130, %p131
    %p133 = scmp.ne.s32.totalorder %s125, %s128
    %p134 = scmp.eq.s32.totalorder %s11, 0
    %p135 = por %p133, %p134
    %p136 = scmp.ne.s32.totalorder %s125, %s128
    %p137 = scmp.eq.s32.totalorder %s16, 1
    %p138 = por %p136, %p137
    %p139 = scmp.ne.s32.totalorder %s128, %s129
    %p140 = scmp.eq.s32.totalorder %s16, 0
    %p141 = por %p139, %p140
    %p142 = scmp.ne.s32.totalorder %s128, %s129
    %p143 = scmp.eq.s32.totalorder %s17, 1
    %p144 = por %p142, %p143
    %p146 = scmp.ne.s32.totalorder %s129, %s145
    %p147 = scmp.eq.s32.totalorder %s17, 0
    %p148 = por %p146, %p147
    %p149 = scmp.le.s32.totalorder 1, %s11
    %p150 = scmp.lt.s32.totalorder %s11, 3
    %p151 = pnand %p149, %p150
    %p152 = pneg %p151
    // Predicated region
    $region9: #{sinkhorn_distance.1} parent=5 // pred_check
      _
    $region10: #{sinkhorn_distance.1} parent=5 // pred_check_branch
      %154 = sbr.rel (%p151) target = $region12
    $region11: #{sinkhorn_distance.1} parent=5 // pred_region
      %s155 = ssub.s32 %s11, 1
    $region12: #{sinkhorn_distance.1} parent=5 // pred_fallthru
      _
    %p156 = scmp.lt.s32.totalorder %s11, 2
    // Predicated region
    $region13: #{sinkhorn_distance.1} parent=5 // pred_check
      %p157 = pneg %p156
    $region14: #{sinkhorn_distance.1} parent=5 // pred_check_branch
      %159 = sbr.rel (%p157) target = $region16
    $region15: #{sinkhorn_distance.1} parent=5 // pred_region
      // Predicated region
      $region17: #{sinkhorn_distance.1} parent=15 // pred_check
        %p160 = pneg %p31
      $region18: #{sinkhorn_distance.1} parent=15 // pred_check_branch
        %162 = sbr.rel (%p160) target = $region20
      $region19: #{sinkhorn_distance.1} parent=15 // pred_region
        %p163 = scmp.lt.s32.totalorder %s11, 1
        %s164 = scalar_select %p163, %s11, 1
        %s165 = smul.addr %s164, 3
        %s166 = smul.addr %s165, 8
        %s167 = scalar_lea.vmem %s0, %s166
      $region20: #{sinkhorn_distance.1} parent=15 // pred_fallthru
        _
      // Predicated region
      $region21: #{sinkhorn_distance.1} parent=15 // pred_check
        %p168 = pneg %p57
      $region22: #{sinkhorn_distance.1} parent=15 // pred_check_branch
        %170 = sbr.rel (%p168) target = $region24
      $region23: #{sinkhorn_distance.1} parent=15 // pred_region
        %p171 = scmp.lt.s32.totalorder %s11, 1
        %s172 = scalar_select %p171, %s11, 1
        %s173 = scalar_lea.vmem %s1, %s172
      $region24: #{sinkhorn_distance.1} parent=15 // pred_fallthru
        _
      // Predicated region
      $region25: #{sinkhorn_distance.1} parent=15 // pred_check
        %p174 = pneg %p83
      $region26: #{sinkhorn_distance.1} parent=15 // pred_check_branch
        %176 = sbr.rel (%p174) target = $region28
      $region27: #{sinkhorn_distance.1} parent=15 // pred_region
        %p177 = scmp.lt.s32.totalorder %s11, 1
        %s178 = scalar_select %p177, %s11, 1
        %s179 = smul.addr %s178, 3
        %s180 = smul.addr %s179, 8
        %s181 = scalar_lea.vmem %s2, %s180
      $region28: #{sinkhorn_distance.1} parent=15 // pred_fallthru
        _
    $region16: #{sinkhorn_distance.1} parent=5 // pred_fallthru
      _
    %p182 = scmp.le.s32.totalorder 1, %s11
    %p183 = scmp.lt.s32.totalorder %s11, 3
    %p184 = pnand %p182, %p183
    %p185 = pneg %p184
    // Predicated region
    $region29: #{sinkhorn_distance.1} parent=5 // pred_check
      _
    $region30: #{sinkhorn_distance.1} parent=5 // pred_check_branch
      %187 = sbr.rel (%p184) target = $region32
    $region31: #{sinkhorn_distance.1} parent=5 // pred_region
      %s188 = ssub.s32 %s11, 1
      %p189 = scmp.lt.s32.totalorder %s16, 1
      %s190 = scalar_select %p189, %s16, 1
      %s191 = smul.addr %s190, 3
      %s192 = smul.addr %s191, 8
      %s193 = scalar_lea.vmem %s0, %s192
      %p194 = pneg %p37
      %p195 = pneg %p34
      %p196 = scmp.lt.s32.totalorder %s16, 1
      %s197 = scalar_select %p196, %s16, 1
      %s198 = scalar_lea.vmem %s1, %s197
      %p199 = pneg %p63
      %p200 = pneg %p60
      %p201 = scmp.lt.s32.totalorder %s16, 1
      %s202 = scalar_select %p201, %s16, 1
      %s203 = smul.addr %s202, 3
      %s204 = smul.addr %s203, 8
      %s205 = scalar_lea.vmem %s2, %s204
      %p206 = pneg %p89
      %p207 = pneg %p86
      %p208 = pneg %p115
      %p209 = pneg %p112
      %p210 = scmp.lt.s32.totalorder %s16, 1
      %s211 = scalar_select %p210, %s16, 1
      %s212 = scalar_lea.vmem %s3, %s211
      %p213 = pneg %p141
      %p214 = pneg %p138
      %p215 = scmp.lt.s32.totalorder %s16, 1
      %s216 = scalar_select %p215, %s16, 1
      %s217 = smul.addr %s216, 3
      %s218 = smul.addr %s217, 8
      %s219 = scalar_lea.vmem %s4, %s218
      %p220 = scmp.lt.s32.totalorder %s16, 1
      %s221 = scalar_select %p220, %s16, 1
      %s222 = smul.addr %s221, 3
      %s223 = smul.addr %s222, 8
      %s224 = scalar_lea.vmem %s0, %s223
      %p225 = scmp.lt.s32.totalorder %s16, 1
      %s226 = scalar_select %p225, %s16, 1
      %s227 = scalar_lea.vmem %s1, %s226
      %p228 = scmp.lt.s32.totalorder %s16, 1
      %s229 = scalar_select %p228, %s16, 1
      %s230 = smul.addr %s229, 3
      %s231 = smul.addr %s230, 8
      %s232 = scalar_lea.vmem %s2, %s231
      %p233 = scmp.lt.s32.totalorder %s16, 1
      %s234 = scalar_select %p233, %s16, 1
      %s235 = scalar_lea.vmem %s3, %s234
      %p236 = scmp.lt.s32.totalorder %s16, 1
      %s237 = scalar_select %p236, %s16, 1
      %s238 = smul.addr %s237, 3
      %s239 = smul.addr %s238, 8
      %s240 = scalar_lea.vmem %s4, %s239
      %v241 = vld [vmem:[%s224] sm:$0xff]
      %v242 = vld [vmem:[%s224 + $0x8] sm:$0xff]
      %v243 = vld [vmem:[%s224 + $0x10] sm:$0xff]
      %v244 = vld [vmem:[%s227] sm:$0x1]
      %v245 = vld [vmem:[%s232] sm:$0xff]
      %v246 = vld [vmem:[%s232 + $0x8] sm:$0xff]
      %v247 = vld [vmem:[%s232 + $0x10] sm:$0xff]
      %v248 = vadd.f32 %v241, 1e-08
      %v249 = vadd.f32 %v242, 1e-08
      %v250 = vadd.f32 %v243, 1e-08
      %v251 = vlog2.pop %v248
      %v252 = vmul.f32 %v251, 0.6931472
      %v253 = vlog2.pop %v249
      %v254 = vmul.f32 %v253, 0.6931472
      %v255 = vlog2.pop %v250
      %v256 = vmul.f32 %v255, 0.6931472
      %v257 = vadd.f32 %v244, 1e-08
      %v258 = vlog2.pop %v257
      %v259 = vmul.f32 %v258, 0.6931472
      %v260 = vsub.f32 2.0, %v245
      %v261 = vsub.f32 2.0, %v246
      %v262 = vsub.f32 2.0, %v247
      %v263 = vmul.f32 %v260, 1000.0
      %v264 = vmul.f32 %v261, 1000.0
      %v265 = vmul.f32 %v262, 1000.0
      loop: start=0, step=1, limit=100
      $region33: #{sinkhorn_distance.1} parent=31 // loop_pre_header
        _
      $region34: #{sinkhorn_distance.1} parent=31 // loop_header
        %s267 = sphi 0, %s271
        %p268 = scmp.ge.s32.totalorder %s267, 100
        %v272 = vphi %v263, %v501
        %v273 = vphi %v264, %v502
        %v274 = vphi %v265, %v503
      $region35: #{sinkhorn_distance.1} parent=31 // loop_header_branch
        %270 = sbr.rel (%p268) target = $region39
      $region36: #{sinkhorn_distance.1} parent=31 // loop_body
        %v275 = vmax.f32 %v272, %v273
        %v276 = vmax.f32 %v275, %v274
        %v277 = vrot.slane %v276, 4
        %v278 = vmax.f32 %v276, %v277
        %v279 = vrot.slane %v278, 2
        %v280 = vmax.f32 %v278, %v279
        %v281 = vrot.slane %v280, 1
        %v282 = vmax.f32 %v280, %v281
        %v283 = vsub.f32 %v272, %v282
        %v284 = vsub.f32 %v273, %v282
        %v285 = vsub.f32 %v274, %v282
        %v286 = vmul.f32 %v283, 1.442695
        %v287 = vpow.pop %v286
        %v288 = vmul.f32 %v284, 1.442695
        %v289 = vpow.pop %v288
        %v290 = vmul.f32 %v285, 1.442695
        %v291 = vpow.pop %v290
        %vm292 = vcmask 195584
        %v294 = vsel %vm292, 1.0, 0
        %296 = vmatprep.subr.mxu0 0.0
        %297 = vmatpush1.msra.mxu0 %v287
        %298 = vmatprep.subr.mxu0 0.0
        %299 = vmatpush1.msra.mxu0 %v289
        %300 = vmatprep.subr.mxu0 0.0
        %301 = vmatpush1.msra.mxu0 %v291
        %302 = vmatprep.subr.mxu0 0.0
        %303 = vmatpush1.msra.mxu0 0.0
        %304 = vmatprep.subr.mxu0 0.0
        %305 = vmatpush1.msra.mxu0 0.0
        %306 = vmatprep.subr.mxu0 0.0
        %307 = vmatpush1.msra.mxu0 0.0
        %308 = vmatprep.subr.mxu0 0.0
        %309 = vmatpush1.msra.mxu0 0.0
        %310 = vmatprep.subr.mxu0 0.0
        %311 = vmatpush1.msra.mxu0 0.0
        %312 = vmatprep.subr.mxu0 0.0
        %313 = vmatpush1.msra.mxu0 0.0
        %314 = vmatprep.subr.mxu0 0.0
        %315 = vmatpush1.msra.mxu0 0.0
        %316 = vmatprep.subr.mxu0 0.0
        %317 = vmatpush1.msra.mxu0 0.0
        %318 = vmatprep.subr.mxu0 0.0
        %319 = vmatpush1.msra.mxu0 0.0
        %320 = vmatprep.subr.mxu0 0.0
        %321 = vmatpush1.msra.mxu0 0.0
        %322 = vmatprep.subr.mxu0 0.0
        %323 = vmatpush1.msra.mxu0 0.0
        %324 = vmatprep.subr.mxu0 0.0
        %325 = vmatpush1.msra.mxu0 0.0
        %326 = vmatprep.subr.mxu0 0.0
        %327 = vmatpush1.msra.mxu0 0.0
        %328 = vmatprep.subr.mxu0 0.0
        %329 = vmatpush1.msra.mxu0 0.0
        %330 = vmatprep.subr.mxu0 0.0
        %331 = vmatpush1.msra.mxu0 0.0
        %332 = vmatprep.subr.mxu0 0.0
        %333 = vmatpush1.msra.mxu0 0.0
        %334 = vmatprep.subr.mxu0 0.0
        %335 = vmatpush1.msra.mxu0 0.0
        %336 = vmatprep.subr.mxu0 0.0
        %337 = vmatpush1.msra.mxu0 0.0
        %338 = vmatprep.subr.mxu0 0.0
        %339 = vmatpush1.msra.mxu0 0.0
        %340 = vmatprep.subr.mxu0 0.0
        %341 = vmatpush1.msra.mxu0 0.0
        %342 = vmatprep.subr.mxu0 0.0
        %343 = vmatpush1.msra.mxu0 0.0
        %344 = vmatprep.subr.mxu0 0.0
        %345 = vmatpush1.msra.mxu0 0.0
        %346 = vmatprep.subr.mxu0 0.0
        %347 = vmatpush1.msra.mxu0 0.0
        %348 = vmatprep.subr.mxu0 0.0
        %349 = vmatpush1.msra.mxu0 0.0
        %350 = vmatprep.subr.mxu0 0.0
        %351 = vmatpush1.msra.mxu0 0.0
        %352 = vmatprep.subr.mxu0 0.0
        %353 = vmatpush1.msra.mxu0 0.0
        %354 = vmatprep.subr.mxu0 0.0
        %355 = vmatpush1.msra.mxu0 0.0
        %356 = vmatprep.subr.mxu0 0.0
        %357 = vmatpush1.msra.mxu0 0.0
        %358 = vmatprep.subr.mxu0 0.0
        %359 = vmatpush1.msra.mxu0 0.0
        %360 = vmatprep.mubr.f32.mxu0 0.0
        %361 = vmatmul.mubr.f32.gmra.mrb[0].mxu0 %v294
        %v362 = vpop.f32.mrb[0].mxu0
        %v363 = vadd.f32 0.0, %v362
        %v364 = vpop.f32.mrb[0].mxu0
        %365 = vdwg.mxu0
        %v366 = vlog2.pop %v363
        %v367 = vmul.f32 %v366, 0.6931472
        %v368 = vadd.f32 %v367, %v282
        %v369 = vsub.f32 %v259, %v368
        %v371 = vlaneseq
        %v372 = vshrl.u32 %v371, 7
        %v373 = vsub.s32 0, %v372
        %v374 = vrot.slane %v369, %v373
        %v376 = vadd.f32 %v272, %v374
        %v377 = vadd.f32 %v273, %v374
        %v378 = vadd.f32 %v274, %v374
        %379 = vmax.xlane.f32.xlu0 %v376
        %v380 = vpop.xlane.xlu0 %379
        %381 = vmax.xlane.f32.xlu0 %v377
        %v382 = vpop.xlane.xlu0 %381
        %383 = vmax.xlane.f32.xlu0 %v378
        %v384 = vpop.xlane.xlu0 %383
        %v385 = vsub.f32 %v376, %v380
        %v386 = vsub.f32 %v377, %v382
        %v387 = vsub.f32 %v378, %v384
        %v388 = vmul.f32 %v385, 1.442695
        %v389 = vpow.pop %v388
        %v390 = vmul.f32 %v386, 1.442695
        %v391 = vpow.pop %v390
        %v392 = vmul.f32 %v387, 1.442695
        %v393 = vpow.pop %v392
        %394 = vmatprep.subr.mxu0 0.0
        %395 = vmatpush1.msra.mxu0 1.0
        %396 = vmatprep.subr.mxu0 0.0
        %397 = vmatpush1.msra.mxu0 1.0
        %398 = vmatprep.subr.mxu0 0.0
        %399 = vmatpush1.msra.mxu0 1.0
        %400 = vmatprep.subr.mxu0 0.0
        %401 = vmatpush1.msra.mxu0 1.0
        %402 = vmatprep.subr.mxu0 0.0
        %403 = vmatpush1.msra.mxu0 1.0
        %404 = vmatprep.subr.mxu0 0.0
        %405 = vmatpush1.msra.mxu0 1.0
        %406 = vmatprep.subr.mxu0 0.0
        %407 = vmatpush1.msra.mxu0 1.0
        %408 = vmatprep.subr.mxu0 0.0
        %409 = vmatpush1.msra.mxu0 1.0
        %410 = vmatprep.subr.mxu0 0.0
        %411 = vmatpush1.msra.mxu0 1.0
        %412 = vmatprep.subr.mxu0 0.0
        %413 = vmatpush1.msra.mxu0 1.0
        %414 = vmatprep.subr.mxu0 0.0
        %415 = vmatpush1.msra.mxu0 1.0
        %416 = vmatprep.subr.mxu0 0.0
        %417 = vmatpush1.msra.mxu0 1.0
        %418 = vmatprep.subr.mxu0 0.0
        %419 = vmatpush1.msra.mxu0 1.0
        %420 = vmatprep.subr.mxu0 0.0
        %421 = vmatpush1.msra.mxu0 1.0
        %422 = vmatprep.subr.mxu0 0.0
        %423 = vmatpush1.msra.mxu0 1.0
        %424 = vmatprep.subr.mxu0 0.0
        %425 = vmatpush1.msra.mxu0 1.0
        %426 = vmatprep.subr.mxu0 0.0
        %427 = vmatpush1.msra.mxu0 0.0
        %428 = vmatprep.subr.mxu0 0.0
        %429 = vmatpush1.msra.mxu0 0.0
        %430 = vmatprep.subr.mxu0 0.0
        %431 = vmatpush1.msra.mxu0 0.0
        %432 = vmatprep.subr.mxu0 0.0
        %433 = vmatpush1.msra.mxu0 0.0
        %434 = vmatprep.subr.mxu0 0.0
        %435 = vmatpush1.msra.mxu0 0.0
        %436 = vmatprep.subr.mxu0 0.0
        %437 = vmatpush1.msra.mxu0 0.0
        %438 = vmatprep.subr.mxu0 0.0
        %439 = vmatpush1.msra.mxu0 0.0
        %440 = vmatprep.subr.mxu0 0.0
        %441 = vmatpush1.msra.mxu0 0.0
        %442 = vmatprep.subr.mxu0 0.0
        %443 = vmatpush1.msra.mxu0 0.0
        %444 = vmatprep.subr.mxu0 0.0
        %445 = vmatpush1.msra.mxu0 0.0
        %446 = vmatprep.subr.mxu0 0.0
        %447 = vmatpush1.msra.mxu0 0.0
        %448 = vmatprep.subr.mxu0 0.0
        %449 = vmatpush1.msra.mxu0 0.0
        %450 = vmatprep.subr.mxu0 0.0
        %451 = vmatpush1.msra.mxu0 0.0
        %452 = vmatprep.subr.mxu0 0.0
        %453 = vmatpush1.msra.mxu0 0.0
        %454 = vmatprep.subr.mxu0 0.0
        %455 = vmatpush1.msra.mxu0 0.0
        %456 = vmatprep.subr.mxu0 0.0
        %457 = vmatpush1.msra.mxu0 0.0
        %458 = vmatprep.mubr.f32.mxu0 0.0
        %459 = vmatmul.mubr.f32.gmra.mrb[0].mxu0 %v389
        %v460 = vpop.f32.mrb[0].mxu0
        %v461 = vadd.f32 0.0, %v460
        %v462 = vpop.f32.mrb[0].mxu0
        %463 = vmatprep.mubr.f32.mxu0 0.0
        %464 = vmatmul.mubr.f32.gmra.mrb[0].mxu0 %v391
        %v465 = vpop.f32.mrb[0].mxu0
        %v466 = vadd.f32 0.0, %v465
        %v467 = vpop.f32.mrb[0].mxu0
        %468 = vmatprep.mubr.f32.mxu0 0.0
        %469 = vmatmul.mubr.f32.gmra.mrb[0].mxu0 %v393
        %v470 = vpop.f32.mrb[0].mxu0
        %v471 = vadd.f32 0.0, %v470
        %v472 = vpop.f32.mrb[0].mxu0
        %473 = vdwg.mxu0
        %v474 = vlog2.pop %v461
        %v475 = vmul.f32 %v474, 0.6931472
        %v476 = vlog2.pop %v466
        %v477 = vmul.f32 %v476, 0.6931472
        %v478 = vlog2.pop %v471
        %v479 = vmul.f32 %v478, 0.6931472
        %v480 = vadd.f32 %v475, %v380
        %v481 = vadd.f32 %v477, %v382
        %v482 = vadd.f32 %v479, %v384
        %v483 = vsub.f32 %v252, %v480
        %v484 = vsub.f32 %v254, %v481
        %v485 = vsub.f32 %v256, %v482
        %487 = vset.pattern.permute.xlu0 0
        %488 = vperm.xlu0 %487, %v483
        %v489 = vpop.permute.xlu0 %488
        %492 = vset.pattern.permute.xlu0 0
        %493 = vperm.xlu0 %492, %v484
        %v494 = vpop.permute.xlu0 %493
        %497 = vset.pattern.permute.xlu0 0
        %498 = vperm.xlu0 %497, %v485
        %v499 = vpop.permute.xlu0 %498
        %v501 = vadd.f32 %v376, %v489
        %v502 = vadd.f32 %v377, %v494
        %v503 = vadd.f32 %v378, %v499
      $region37: #{sinkhorn_distance.1} parent=31 // loop_footer
        %s271 = sadd.s32 1, %s267
      $region38: #{sinkhorn_distance.1} parent=31 // loop_footer_branch
        %266 = sbr.rel target = $region34
      $region39: #{sinkhorn_distance.1} parent=31 // loop_exit
        _
      %v504 = vmul.f32 %v272, 1.442695
      %v505 = vpow.pop %v504
      %v506 = vmul.f32 %v273, 1.442695
      %v507 = vpow.pop %v506
      %v508 = vmul.f32 %v274, 1.442695
      %v509 = vpow.pop %v508
      %510 = vst [vmem:[%s240] sm:$0xff] %v505
      %511 = vst [vmem:[%s240 + $0x8] sm:$0xff] %v507
      %512 = vst [vmem:[%s240 + $0x10] sm:$0xff] %v509
      %v513 = vmul.f32 %v505, %v245
      %v514 = vmul.f32 %v507, %v246
      %v515 = vmul.f32 %v509, %v247
      %516 = vadd.xlane.f32.xlu0 %v513
      %v517 = vpop.xlane.xlu0 %516
      %518 = vadd.xlane.f32.xlu0 %v514
      %v519 = vpop.xlane.xlu0 %518
      %520 = vadd.xlane.f32.xlu0 %v515
      %v521 = vpop.xlane.xlu0 %520
      %v522 = vadd.f32 %v517, %v519
      %v523 = vadd.f32 %v522, %v521
      %v524 = vrot.slane %v523, 4
      %v525 = vadd.f32 %v523, %v524
      %v526 = vrot.slane %v525, 2
      %v527 = vadd.f32 %v525, %v526
      %v528 = vrot.slane %v527, 1
      %v529 = vadd.f32 %v527, %v528
      %vm530 = vcmask 0
      %531 = vst.msk [vmem:[%s235] sm:$0x1] %vm530, %v529
      %p532 = scmp.lt.s32.totalorder %s16, 1
      %s533 = scalar_select %p532, %s16, 1
      %s534 = scalar_lea.vmem %s3, %s533
      %p535 = scmp.lt.s32.totalorder %s16, 1
      %s536 = scalar_select %p535, %s16, 1
      %s537 = smul.addr %s536, 3
      %s538 = smul.addr %s537, 8
      %s539 = scalar_lea.vmem %s4, %s538
      // Predicated region
      $region40: #{sinkhorn_distance.1} parent=31 // pred_check
        %p540 = pneg %p112
      $region41: #{sinkhorn_distance.1} parent=31 // pred_check_branch
        %542 = sbr.rel (%p540) target = $region43
      $region42: #{sinkhorn_distance.1} parent=31 // pred_region
        _
      $region43: #{sinkhorn_distance.1} parent=31 // pred_fallthru
        _
      // Predicated region
      $region44: #{sinkhorn_distance.1} parent=31 // pred_check
        %p543 = pneg %p138
      $region45: #{sinkhorn_distance.1} parent=31 // pred_check_branch
        %545 = sbr.rel (%p543) target = $region47
      $region46: #{sinkhorn_distance.1} parent=31 // pred_region
        _
      $region47: #{sinkhorn_distance.1} parent=31 // pred_fallthru
        _
    $region32: #{sinkhorn_distance.1} parent=5 // pred_fallthru
      _
    %p546 = scmp.le.s32.totalorder 2, %s11
    // Predicated region
    $region48: #{sinkhorn_distance.1} parent=5 // pred_check
      %p547 = pneg %p546
    $region49: #{sinkhorn_distance.1} parent=5 // pred_check_branch
      %549 = sbr.rel (%p547) target = $region51
    $region50: #{sinkhorn_distance.1} parent=5 // pred_region
      %s550 = ssub.s32 %s11, 2
      // Predicated region
      $region52: #{sinkhorn_distance.1} parent=50 // pred_check
        %p551 = pneg %p118
      $region53: #{sinkhorn_distance.1} parent=50 // pred_check_branch
        %553 = sbr.rel (%p551) target = $region55
      $region54: #{sinkhorn_distance.1} parent=50 // pred_region
        %p554 = scmp.lt.s32.totalorder %s17, 1
        %s555 = scalar_select %p554, %s17, 1
        %s556 = scalar_lea.vmem %s3, %s555
      $region55: #{sinkhorn_distance.1} parent=50 // pred_fallthru
        _
      // Predicated region
      $region56: #{sinkhorn_distance.1} parent=50 // pred_check
        %p557 = pneg %p144
      $region57: #{sinkhorn_distance.1} parent=50 // pred_check_branch
        %559 = sbr.rel (%p557) target = $region59
      $region58: #{sinkhorn_distance.1} parent=50 // pred_region
        %p560 = scmp.lt.s32.totalorder %s17, 1
        %s561 = scalar_select %p560, %s17, 1
        %s562 = smul.addr %s561, 3
        %s563 = smul.addr %s562, 8
        %s564 = scalar_lea.vmem %s4, %s563
      $region59: #{sinkhorn_distance.1} parent=50 // pred_fallthru
        _
    $region51: #{sinkhorn_distance.1} parent=5 // pred_fallthru
      _
  $region6: #{sinkhorn_distance.1} parent=0 // loop_footer
    %s15 = sadd.s32 1, %s11
  $region7: #{sinkhorn_distance.1} parent=0 // loop_footer_branch
    %10 = sbr.rel target = $region3
  $region8: #{sinkhorn_distance.1} parent=0 // loop_exit
    _

</llo_original>
